<compile_context>
chip_gen: v7x
topology: tpu7x:2x2x1
jax: 0.10.0
libtpu: 0.0.40
codegen_flags: <defaults>
</compile_context>

<pallas_src>
import jax
import jax.numpy as jnp
import numpy as np
from jax.experimental import pallas as pl
from jax.experimental.pallas import tpu as pltpu


def _round_up(x, m):
    return (x + m - 1) // m * m


def _masked_nll_kernel(pred_ref, tgt_ref, msk_ref, out_ref, acc_ref):
    """Grid = (batch_blocks, class_blocks); class axis is the reduction axis."""
    c_blk = pl.program_id(1)
    n_c = pl.num_programs(1)

    b_tile, c_tile = pred_ref.shape
    acc_w = acc_ref.shape[-1]

    @pl.when(c_blk == 0)
    def _init():
        acc_ref[...] = jnp.zeros_like(acc_ref)

    pred = pred_ref[...]                               # [BT, CT] native dtype (bf16 stays bf16)
    # Block-local target: one [BT,1] subtract instead of a per-element global-iota add;
    # the iota below is grid-invariant so Mosaic can treat it as a constant.
    tgt_local = tgt_ref[...] - c_blk * c_tile          # [BT, 1] int32
    col = jax.lax.broadcasted_iota(jnp.int32, (b_tile, c_tile), 1)
    zero = jnp.zeros((), dtype=pred.dtype)
    contrib = jnp.where(col == tgt_local, pred, zero)  # [BT, CT]; <= 1 nonzero per row

    if acc_w == 128:
        # Fold 128-lane chunks with pure VALU adds (exact: at most one nonzero per
        # row per block); the XLU cross-lane reduce is deferred to the finalize.
        folded = contrib[:, 0:128]
        for j in range(1, c_tile // 128):
            folded = folded + contrib[:, j * 128:(j + 1) * 128]
        acc_ref[...] += folded.astype(jnp.float32)
    else:
        # Small, non-128-aligned class dim (single class block): reduce directly.
        acc_ref[...] += jnp.sum(contrib, axis=1, keepdims=True).astype(jnp.float32)

    @pl.when(c_blk == n_c - 1)
    def _finalize():
        if acc_w == 128:
            picked = jnp.sum(acc_ref[...], axis=1, keepdims=True)   # [BT, 1], one XLU reduce
        else:
            picked = acc_ref[...]                                   # [BT, 1]
        msk = msk_ref[...]                                          # [BT, 1] f32 (0 on pad rows)
        # Multiply by the mask (not where): identical for binary masks, and also
        # correct for fractional sample weights.
        nll = -jnp.log(picked + 1e-5) * msk                         # matches torch log(p + 1e-05)
        # Per-batch-block partial sum stored as a lane-dense (8, 128) tile.
        nll_b = jnp.broadcast_to(nll, (b_tile, 128))
        partial = jnp.sum(nll_b, axis=0, keepdims=True)             # [1, 128]; every lane = block sum
        out_ref[...] = jnp.broadcast_to(partial, (8, 128))


def masked_nll_loss_pallas(pred_y, target_y, mask, *, b_tile_max=1024):
    """pred_y: [B, C] softmax probs (any float dtype); target_y: [B] int; mask: [B] {0,1}."""
    B, C = pred_y.shape
    itemsize = jnp.dtype(pred_y.dtype).itemsize

    # Batch tile: dtype-native sublane multiple; aim for >= 4 batch blocks so the
    # "parallel" axis shards across both v7x TensorCores and pipelines deeply.
    sub = {1: 32, 2: 16}.get(itemsize, 8)
    b_tile = _round_up(max(1, pl.cdiv(B, 4)), sub)
    b_tile = max(sub, min(b_tile, b_tile_max))
    nb = pl.cdiv(B, b_tile)
    b_pad = nb * b_tile

    # Class tile: ~4 MiB per pred buffer (double-buffered -> ~8 MiB), multiple of
    # 128 so large / non-128-aligned C uses partial trailing blocks instead of a
    # single full-C block that would blow past v7x's 64 MiB VMEM.
    c_tile_max = max(128, ((4 << 20) // (b_tile * itemsize)) // 128 * 128)
    c_tile = C if C <= c_tile_max else c_tile_max
    nc = pl.cdiv(C, c_tile)
    acc_w = 128 if (c_tile % 128 == 0) else 1

    tgt2d = target_y.astype(jnp.int32).reshape(B, 1)
    msk2d = mask.astype(jnp.float32).reshape(B, 1)
    if b_pad != B:
        # Padded rows: target -1 (never matches a column), mask 0 -> contribute 0.
        # pred itself is NOT padded (garbage rows/cols are never selected).
        tgt2d = jnp.pad(tgt2d, ((0, b_pad - B), (0, 0)), constant_values=-1)
        msk2d = jnp.pad(msk2d, ((0, b_pad - B), (0, 0)), constant_values=0.0)

    cost = pl.CostEstimate(
        flops=3 * B * C,
        transcendentals=b_pad,
        bytes_accessed=B * C * itemsize + 2 * b_pad * 4 + nb * 8 * 128 * 4,
    )

    partials = pl.pallas_call(
        _masked_nll_kernel,
        out_shape=jax.ShapeDtypeStruct((nb * 8, 128), jnp.float32),
        grid_spec=pltpu.PrefetchScalarGridSpec(
            num_scalar_prefetch=0,
            grid=(nb, nc),
            in_specs=[
                pl.BlockSpec((b_tile, c_tile), lambda i, c: (i, c)),
                pl.BlockSpec((b_tile, 1), lambda i, c: (i, 0)),
                pl.BlockSpec((b_tile, 1), lambda i, c: (i, 0)),
            ],
            out_specs=pl.BlockSpec((8, 128), lambda i, c: (i, 0)),
            scratch_shapes=[pltpu.VMEM((b_tile, acc_w), jnp.float32)],
        ),
        compiler_params=pltpu.CompilerParams(
            dimension_semantics=("parallel", "arbitrary"),
            vmem_limit_bytes=32 * 1024 * 1024,
        ),
        cost_estimate=cost,
    )(pred_y, tgt2d, msk2d)

    # Tiny O(nb) / O(B) reductions in the wrapper.
    num = jnp.sum(partials[::8, 0])
    den = jnp.sum(mask.astype(jnp.float32))
    safe_den = jnp.where(den > 0.0, den, jnp.float32(1.0))  # keep grads NaN-free when den == 0
    return jnp.where(den > 0.0, num / safe_den, jnp.float32(0.0))


def masked_nll_loss(pred_y, target_y, mask, return_masked_tensors=False):
    """Full module forward: (loss, mask_pred_y, mask_target_y).

    The loss is computed by the Pallas kernel with no host sync. The masked_select
    outputs have data-dependent shapes (no jit/Pallas equivalent), so they are only
    materialized on the host when explicitly requested, keeping the hot path free
    of device->host pulls.
    """
    loss = masked_nll_loss_pallas(pred_y, target_y, mask)
    if not return_masked_tensors:
        return loss, None, None
    # TODO(synk): dynamic-shape masked_select has no Pallas equivalent; host-side on request only.
    mask_np = np.asarray(mask) == 1
    mask_pred_y = np.asarray(pred_y)[mask_np]
    mask_target_y = np.asarray(target_y)[mask_np]
    return loss, mask_pred_y, mask_target_y


if __name__ == "__main__":
    key = jax.random.PRNGKey(0)
    B, C = 8, 4

    k1, k2, k3 = jax.random.split(key, 3)
    logits = jax.random.normal(k1, (B, C), dtype=jnp.float32)
    pred_y = jax.nn.softmax(logits, axis=-1)                 # softmax probabilities
    target_y = jax.random.randint(k2, (B,), 0, C, dtype=jnp.int32)
    mask = (jax.random.uniform(k3, (B,)) > 0.3).astype(jnp.int32)

    loss, mask_pred_y, mask_target_y = masked_nll_loss(
        pred_y, target_y, mask, return_masked_tensors=True)
    loss = jax.block_until_ready(loss)

    # Reference check in plain numpy.
    pred_np = np.asarray(pred_y)
    tgt_np = np.asarray(target_y)
    msk_np = np.asarray(mask).astype(np.float32)
    picked = pred_np[np.arange(B), tgt_np]
    num = np.sum(-np.log(picked + 1e-5) * msk_np)
    den = np.sum(msk_np)
    ref = np.float32(num / den) if den > 0 else np.float32(0.0)

    assert np.allclose(np.asarray(loss), ref, rtol=1e-5, atol=1e-6), (loss, ref)
    assert mask_pred_y.shape[0] == int(den)
    assert mask_target_y.shape[0] == int(den)

    print("KERNEL_OK")
</pallas_src>

<mosaic_0001>
module attributes {stable_mosaic.version = 11 : i64} {
  func.func @_masked_nll_kernel(%arg0: i32, %arg1: i32, %arg2: memref<8x4xf32, #tpu.memory_space<vmem>>, %arg3: memref<8x1xi32, #tpu.memory_space<vmem>>, %arg4: memref<8x1xf32, #tpu.memory_space<vmem>>, %arg5: memref<8x128xf32, #tpu.memory_space<vmem>>, %arg6: memref<8x1xf32, #tpu.memory_space<vmem>>) attributes {dimension_semantics = [#tpu.dimension_semantics<parallel>, #tpu.dimension_semantics<arbitrary>], iteration_bounds = array<i64: 1, 1>, scalar_prefetch = 0 : i64, scratch_operands = 1 : i64, tpu.core_type = #tpu.core_type<tc>, window_params = [{transform_indices = @transform_0, window_bounds = array<i64: 8, 4>}, {transform_indices = @transform_1, window_bounds = array<i64: 8, 1>}, {transform_indices = @transform_2, window_bounds = array<i64: 8, 1>}, {transform_indices = @transform_3, window_bounds = array<i64: 8, 128>}]} {
    %c0_i32 = arith.constant 0 : i32
    %0 = arith.cmpi eq, %arg1, %c0_i32 : i32
    %1 = arith.extui %0 : i1 to i32
    %c0_i32_0 = arith.constant 0 : i32
    %2 = arith.cmpi ne, %1, %c0_i32_0 : i32
    scf.if %2 {
      %cst_11 = arith.constant 0.000000e+00 : f32
      %21 = vector.broadcast %cst_11 : f32 to vector<8x1xf32>
      %c0_12 = arith.constant 0 : index
      %c0_13 = arith.constant 0 : index
      %22 = vector.load %arg6[%c0_12, %c0_13] : memref<8x1xf32, #tpu.memory_space<vmem>>, vector<8x1xf32>
      tpu.vector_store %arg6[%c0_12, %c0_13], %21 {strides = array<i32>} : memref<8x1xf32, #tpu.memory_space<vmem>>, vector<8x1xf32>,
    } else {
    }
    %c0 = arith.constant 0 : index
    %c0_1 = arith.constant 0 : index
    %3 = vector.load %arg2[%c0, %c0_1] : memref<8x4xf32, #tpu.memory_space<vmem>>, vector<8x4xf32>
    %c0_2 = arith.constant 0 : index
    %c0_3 = arith.constant 0 : index
    %4 = vector.load %arg3[%c0_2, %c0_3] : memref<8x1xi32, #tpu.memory_space<vmem>>, vector<8x1xi32>
    %c4_i32 = arith.constant 4 : i32
    %5 = arith.muli %arg1, %c4_i32 : i32
    %6 = vector.broadcast %5 : i32 to vector<8x1xi32>
    %7 = arith.subi %4, %6 : vector<8x1xi32>
    %8 = tpu.iota {dimensions = array<i32: 1>} : vector<8x4xi32>
    %9 = vector.broadcast %7 : vector<8x1xi32> to vector<8x4xi32>
    %10 = arith.cmpi eq, %8, %9 : vector<8x4xi32>
    %cst = arith.constant 0.000000e+00 : f32
    %11 = vector.broadcast %cst : f32 to vector<8x4xf32>
    %12 = arith.select %10, %3, %11 : vector<8x4xi1>, vector<8x4xf32>
    %c0_4 = arith.constant 0 : index
    %c0_5 = arith.constant 0 : index
    %13 = vector.load %arg6[%c0_4, %c0_5] : memref<8x1xf32, #tpu.memory_space<vmem>>, vector<8x1xf32>
    %cst_6 = arith.constant dense<0.000000e+00> : vector<8xf32>
    %14 = vector.multi_reduction <add>, %12, %cst_6 [1] : vector<8x4xf32> to vector<8xf32>
    %15 = vector.shape_cast %14 : vector<8xf32> to vector<8x1xf32>
    %16 = arith.addf %13, %15 : vector<8x1xf32>
    %c0_7 = arith.constant 0 : index
    %c0_8 = arith.constant 0 : index
    %17 = vector.load %arg6[%c0_7, %c0_8] : memref<8x1xf32, #tpu.memory_space<vmem>>, vector<8x1xf32>
    tpu.vector_store %arg6[%c0_7, %c0_8], %16 {strides = array<i32>} : memref<8x1xf32, #tpu.memory_space<vmem>>, vector<8x1xf32>,
    %c0_i32_9 = arith.constant 0 : i32
    %18 = arith.cmpi eq, %arg1, %c0_i32_9 : i32
    %19 = arith.extui %18 : i1 to i32
    %c0_i32_10 = arith.constant 0 : i32
    %20 = arith.cmpi ne, %19, %c0_i32_10 : i32
    scf.if %20 {
      %c0_11 = arith.constant 0 : index
      %c0_12 = arith.constant 0 : index
      %21 = vector.load %arg6[%c0_11, %c0_12] : memref<8x1xf32, #tpu.memory_space<vmem>>, vector<8x1xf32>
      %c0_13 = arith.constant 0 : index
      %c0_14 = arith.constant 0 : index
      %22 = vector.load %arg4[%c0_13, %c0_14] : memref<8x1xf32, #tpu.memory_space<vmem>>, vector<8x1xf32>
      %cst_15 = arith.constant 9.99999974E-6 : f32
      %23 = vector.broadcast %cst_15 : f32 to vector<8x1xf32>
      %24 = arith.addf %21, %23 : vector<8x1xf32>
      %25 = math.log %24 : vector<8x1xf32>
      %cst_16 = arith.constant 0.000000e+00 : f32
      %26 = vector.broadcast %cst_16 : f32 to vector<8x1xf32>
      %27 = arith.subf %26, %25 : vector<8x1xf32>
      %28 = arith.mulf %27, %22 : vector<8x1xf32>
      %29 = vector.shape_cast %28 : vector<8x1xf32> to vector<8x1xf32>
      %30 = vector.broadcast %29 : vector<8x1xf32> to vector<8x128xf32>
      %cst_17 = arith.constant dense<0.000000e+00> : vector<128xf32>
      %31 = vector.multi_reduction <add>, %30, %cst_17 [0] : vector<8x128xf32> to vector<128xf32>
      %32 = vector.shape_cast %31 : vector<128xf32> to vector<1x128xf32>
      %33 = vector.shape_cast %32 : vector<1x128xf32> to vector<1x128xf32>
      %34 = vector.broadcast %33 : vector<1x128xf32> to vector<8x128xf32>
      %c0_18 = arith.constant 0 : index
      %c0_19 = arith.constant 0 : index
      %35 = vector.load %arg5[%c0_18, %c0_19] : memref<8x128xf32, #tpu.memory_space<vmem>>, vector<8x128xf32>
      tpu.vector_store %arg5[%c0_18, %c0_19], %34 {strides = array<i32>} : memref<8x128xf32, #tpu.memory_space<vmem>>, vector<8x128xf32>,
    } else {
    }
    return
  }
  func.func @transform_0(%arg0: i32, %arg1: i32) -> (i32, i32) {
    %c0_i32 = arith.constant 0 : i32
    return %arg0, %arg1 : i32, i32
  }
  func.func @transform_1(%arg0: i32, %arg1: i32) -> (i32, i32) {
    %c0_i32 = arith.constant 0 : i32
    %c0_i32_0 = arith.constant 0 : i32
    return %arg0, %c0_i32 : i32, i32
  }
  func.func @transform_2(%arg0: i32, %arg1: i32) -> (i32, i32) {
    %c0_i32 = arith.constant 0 : i32
    %c0_i32_0 = arith.constant 0 : i32
    return %arg0, %c0_i32 : i32, i32
  }
  func.func @transform_3(%arg0: i32, %arg1: i32) -> (i32, i32) {
    %c0_i32 = arith.constant 0 : i32
    %c0_i32_0 = arith.constant 0 : i32
    return %arg0, %c0_i32 : i32, i32
  }
}

</mosaic_0001>

<llo_original>
// kernel: tpu_custom_call.1
$region0: #{tpu_custom_call.1}
  #allocation0 [shape = 'u32[]', space=smem, size = 0x4, offset = 0x4, fixed_abs, tag = 'smem constant byte address 0x4 - core index']
  #allocation1 [shape = 'u32[144,128]{1,0:T(1,128)}', space=vmem, size = 0x12000, scoped, tag = 'internal scratch']
  #allocation2 [shape = 'f32[8,1]{1,0:T(8,128)}', space=vmem, size = 0x1000, scoped, tag = 'scratch operand']
  %s0 = inlined_call_operand.vmem [shape: f32[8,4], index: 0, kind: input, shape index: {}]
  %s1 = inlined_call_operand.vmem [shape: s32[8,1], index: 1, kind: input, shape index: {}]
  %s2 = inlined_call_operand.vmem [shape: f32[8,1], index: 2, kind: input, shape index: {}]
  %s3 = inlined_call_operand.hbm [shape: f32[8,128], index: 3, kind: output, shape index: {}]
  %s4 = sld [smem:[#allocation0]]
  $region30: #{tpu_custom_call.1} parent=0
    _
  %s6 = ssub.s32 1, %s4
  %s7 = scalar_select 0, %s6, %s4
  $region1: #{tpu_custom_call.1} parent=0
    #allocation3 [shape = 'u8[4096]{0}', space=vmem, size = 0x1000, scoped, tag = 'output window, operand 0, single buffered']
    #allocation4 [shape = 's32[1]{0}', space=sflag, size = 0x4, scoped, tag = 'scoped memory for tpu_custom_call.1']
    %8 = vsyncpa [#allocation4], 0
    // Predicated region
    $region2: #{tpu_custom_call.1} parent=1 // pred_check
      _
    $region3: #{tpu_custom_call.1} parent=1 // pred_check_branch
      %10 = sbr.rel (0) target = $region5
    $region4: #{tpu_custom_call.1} parent=1 // pred_region
      _
    $region5: #{tpu_custom_call.1} parent=1 // pred_fallthru
      _
    // Predicated region
    $region6: #{tpu_custom_call.1} parent=1 // pred_check
      _
    $region7: #{tpu_custom_call.1} parent=1 // pred_check_branch
      %12 = sbr.rel (0) target = $region9
    $region8: #{tpu_custom_call.1} parent=1 // pred_region
      _
    $region9: #{tpu_custom_call.1} parent=1 // pred_fallthru
      _
    // Predicated region
    $region10: #{tpu_custom_call.1} parent=1 // pred_check
      _
    $region11: #{tpu_custom_call.1} parent=1 // pred_check_branch
      %14 = sbr.rel (0) target = $region13
    $region12: #{tpu_custom_call.1} parent=1 // pred_region
      _
    $region13: #{tpu_custom_call.1} parent=1 // pred_fallthru
      _
    %p15 = scmp.eq.s32.totalorder 0, 0
    // Predicated region
    $region14: #{tpu_custom_call.1} parent=1 // pred_check
      %p16 = pneg %p15
    $region15: #{tpu_custom_call.1} parent=1 // pred_check_branch
      %18 = sbr.rel (%p16) target = $region17
    $region16: #{tpu_custom_call.1} parent=1 // pred_region
      %vm19 = vcmask 7168
      %20 = vst.msk [vmem:[#allocation2] sm:$0xff] %vm19, 0.0
    $region17: #{tpu_custom_call.1} parent=1 // pred_fallthru
      _
    %v21 = vld [vmem:[%s0] sm:$0xff]
    %v22 = vld [vmem:[%s1] sm:$0xff]
    %s23 = smul.u32 0, 4
    %v24 = vstv %s23
    %v25 = vsub.s32 %v22, %v24
    %v26 = vlaneseq
    %v27 = vand.u32 %v26, 127
    %28 = vset.pattern.permute.xlu0 0
    %29 = vperm.xlu0 %28, %v25
    %v30 = vpop.permute.xlu0 %29
    %vm31 = vcmp.eq.s32.totalorder %v27, %v30
    %v32 = vsel %vm31, %v21, 0.0
    %v33 = vld [vmem:[#allocation2] sm:$0xff]
    %vm34 = vcmask 31744
    %v35 = vsel %vm34, %v32, 0.0
    %36 = vadd.xlane.f32.xlu0 %v35
    %v37 = vpop.xlane.xlu0 %36
    %v38 = vadd.f32 %v33, %v37
    %vm39 = vcmask 7168
    %40 = vst.msk [vmem:[#allocation2] sm:$0xff] %vm39, %v38
    // Predicated region
    $region18: #{tpu_custom_call.1} parent=1 // pred_check
      %p41 = pneg %p15
    $region19: #{tpu_custom_call.1} parent=1 // pred_check_branch
      %43 = sbr.rel (%p41) target = $region21
    $region20: #{tpu_custom_call.1} parent=1 // pred_region
      %v44 = vld [vmem:[#allocation2] sm:$0xff]
      %v45 = vld [vmem:[%s2] sm:$0xff]
      %v46 = vadd.f32 %v44, 1e-05
      %v47 = vlog2.pop %v46
      %v48 = vmul.f32 %v47, 0.6931472
      %v49 = vsub.f32 0.0, %v48
      %v50 = vmul.f32 %v49, %v45
      %52 = vset.pattern.permute.xlu0 0
      %53 = vperm.xlu0 %52, %v50
      %v54 = vpop.permute.xlu0 %53
      %v56 = vrot.slane %v54, 4
      %v57 = vadd.f32 %v54, %v56
      %v58 = vrot.slane %v57, 2
      %v59 = vadd.f32 %v57, %v58
      %v60 = vrot.slane %v59, 1
      %v61 = vadd.f32 %v59, %v60
      %62 = vst [vmem:[#allocation3] sm:$0xff] %v61
    $region21: #{tpu_custom_call.1} parent=1 // pred_fallthru
      _
    // Predicated region
    $region22: #{tpu_custom_call.1} parent=1 // pred_check
      _
    $region23: #{tpu_custom_call.1} parent=1 // pred_check_branch
      %64 = sbr.rel (0) target = $region25
    $region24: #{tpu_custom_call.1} parent=1 // pred_region
      %s66 = ssub.s32 128, 128
      %67 = vsyncadd [#allocation4], %s66
      %s69 = sshll.u32 [#allocation3], 4
      %s70 = int_to_ptr.vmem [resolvable:$true] %s69
      %72 = dma.vmem_to_hbm [thread:$0]  %s70, 128, %s3, [#allocation4]
    $region25: #{tpu_custom_call.1} parent=1 // pred_fallthru
      _
    // Predicated region
    $region26: #{tpu_custom_call.1} parent=1 // pred_check
      _
    $region27: #{tpu_custom_call.1} parent=1 // pred_check_branch
      %74 = sbr.rel (0) target = $region29
    $region28: #{tpu_custom_call.1} parent=1 // pred_region
      %75 = dma.done [#allocation4], 128
    $region29: #{tpu_custom_call.1} parent=1 // pred_fallthru
      _
    %76 = vsyncpa [#allocation4], 1

</llo_original>
